<compile_context>
chip_gen: v7x
topology: tpu7x:2x2x1
jax: 0.10.0
libtpu: 0.0.40
codegen_flags: <defaults>
</compile_context>

<pallas_src>
import functools

import jax
import jax.numpy as jnp
from jax.experimental import pallas as pl
from jax.experimental.pallas import tpu as pltpu


def _attention_kernel(x_ref, gamma_ref, beta_ref, wqkv_ref, wout_ref, bout_ref,
                      o_ref, *, batch, seq, heads, dim_head, eps):
    f32 = jnp.float32
    bf16 = jnp.bfloat16
    inner = heads * dim_head

    # ---- Hoisted loads / casts (tiny params, cast once) ----
    x = x_ref[...].astype(f32)            # (B*N, D)
    gamma = gamma_ref[...].astype(f32)    # (1, D)
    beta = beta_ref[...].astype(f32)      # (1, D)
    b_out = bout_ref[...].astype(f32)     # (1, D)

    # ---- LayerNorm over last dim (eps inside rsqrt), f32 ----
    mean = jnp.mean(x, axis=-1, keepdims=True)
    xc = x - mean
    var = jnp.mean(xc * xc, axis=-1, keepdims=True)
    xn = xc * jax.lax.rsqrt(var + eps) * gamma + beta          # (B*N, D)

    # ---- Fused QKV projection: one MXU matmul (scale pre-folded into Wq) ----
    qkv = jnp.dot(xn.astype(bf16), wqkv_ref[...],
                  preferred_element_type=f32)                  # (B*N, 3*inner)

    def to_bh(t):
        # (B*N, inner) f32 -> (H*B, N, Dh) bf16, with g = h*batch + b.
        return jnp.concatenate(
            [t[:, h * dim_head:(h + 1) * dim_head].reshape(batch, seq, dim_head)
             for h in range(heads)],
            axis=0).astype(bf16)

    q = to_bh(qkv[:, :inner])              # query scale folded into weight
    k = to_bh(qkv[:, inner:2 * inner])
    v = to_bh(qkv[:, 2 * inner:])

    # ---- Scaled dot-product attention, batched over the fused (H*B) axis ----
    s = jnp.einsum("gnd,gmd->gnm", q, k,
                   preferred_element_type=f32)                 # (H*B, N, N) f32
    m = jnp.max(s, axis=-1, keepdims=True)
    e = jnp.exp(s - m)
    attn = e * pl.reciprocal(jnp.sum(e, axis=-1, keepdims=True), approx=True)

    o_g = jnp.einsum("gnm,gmd->gnd", attn.astype(bf16), v,
                     preferred_element_type=f32)               # (H*B, N, Dh) f32

    # ---- Merge heads back onto lanes: (H*B, N, Dh) -> (B*N, H*Dh) ----
    o5 = o_g.reshape(heads, batch, seq, dim_head)
    out = jnp.concatenate([o5[h] for h in range(heads)], axis=-1)  # (B, N, inner)
    out = out.reshape(batch * seq, inner).astype(bf16)

    # ---- Output projection: single (B*N, inner) @ (inner, D) matmul + bias ----
    proj = jnp.dot(out, wout_ref[...], preferred_element_type=f32) + b_out
    o_ref[...] = proj.astype(o_ref.dtype)


def attention_forward(x, params, *, heads, dim_head):
    """x: (B, N, D) float32.  params: dict of weights (see init_params)."""
    B, N, D = x.shape
    inner = heads * dim_head
    scale = dim_head ** -0.5   # 0.25 for dim_head=16: exact power of two

    # ---- Wrapper-side layout prep (free XLA ops, outside the kernel) ----
    # Fold the softmax scale into the query columns of the fused QKV weight,
    # then cast MXU operands to bf16 (exact for a power-of-two scale).
    w_qkv = params["w_qkv"].at[:, :inner].multiply(scale)          # (D, 3*inner)
    w_qkv_bf = w_qkv.astype(jnp.bfloat16)
    w_out_bf = params["w_out"].astype(jnp.bfloat16)                # (inner, D)
    gamma2 = params["gamma"].reshape(1, D)
    beta2 = params["beta"].reshape(1, D)
    bo2 = params["b_out"].reshape(1, D)
    x_flat = x.reshape(B * N, D)

    kernel = functools.partial(_attention_kernel, batch=B, seq=N,
                               heads=heads, dim_head=dim_head, eps=1e-5)

    out_flat = pl.pallas_call(
        kernel,
        out_shape=jax.ShapeDtypeStruct((B * N, D), x.dtype),
        grid_spec=pltpu.PrefetchScalarGridSpec(
            num_scalar_prefetch=0,
            grid=(1,),   # single invocation: whole problem fits VMEM
            in_specs=[
                pl.BlockSpec((B * N, D), lambda i: (0, 0)),        # x (flattened)
                pl.BlockSpec((1, D), lambda i: (0, 0)),            # ln gamma
                pl.BlockSpec((1, D), lambda i: (0, 0)),            # ln beta
                pl.BlockSpec((D, 3 * inner), lambda i: (0, 0)),    # fused Wqkv (bf16)
                pl.BlockSpec((inner, D), lambda i: (0, 0)),        # W_out (bf16)
                pl.BlockSpec((1, D), lambda i: (0, 0)),            # b_out
            ],
            out_specs=pl.BlockSpec((B * N, D), lambda i: (0, 0)),
        ),
        compiler_params=pltpu.CompilerParams(
            dimension_semantics=("arbitrary",)),
    )(x_flat, gamma2, beta2, w_qkv_bf, w_out_bf, bo2)
    return out_flat.reshape(B, N, D)


def init_params(key, dim, heads, dim_head):
    inner = heads * dim_head
    k1, k2, k3 = jax.random.split(key, 3)
    return {
        "gamma": jnp.ones((dim,), jnp.float32),
        "beta": jnp.zeros((dim,), jnp.float32),
        # Stored as (in, out) so math is x @ W (PyTorch Linear is x @ W.T).
        "w_qkv": jax.random.normal(k1, (dim, 3 * inner), jnp.float32) * 0.05,
        "w_out": jax.random.normal(k2, (inner, dim), jnp.float32) * 0.05,
        "b_out": jax.random.normal(k3, (dim,), jnp.float32) * 0.01,
    }


def _reference(x, params, *, heads, dim_head):
    # Plain-JAX f32 reference mirroring the PyTorch forward.
    mean = jnp.mean(x, axis=-1, keepdims=True)
    var = jnp.mean((x - mean) ** 2, axis=-1, keepdims=True)
    xn = (x - mean) / jnp.sqrt(var + 1e-5) * params["gamma"] + params["beta"]
    qkv = xn @ params["w_qkv"]
    inner = heads * dim_head
    q, k, v = jnp.split(qkv, 3, axis=-1)
    B, N, _ = x.shape

    def split_heads(t):
        return t.reshape(B, N, heads, dim_head).transpose(0, 2, 1, 3)

    q, k, v = map(split_heads, (q, k, v))
    dots = jnp.einsum("bhnd,bhmd->bhnm", q, k) * (dim_head ** -0.5)
    attn = jax.nn.softmax(dots, axis=-1)
    out = jnp.einsum("bhnm,bhmd->bhnd", attn, v)
    out = out.transpose(0, 2, 1, 3).reshape(B, N, inner)
    return out @ params["w_out"] + params["b_out"]


if __name__ == "__main__":
    B, N, dim = 2, 8, 32
    heads, dim_head = 4, 16

    key = jax.random.PRNGKey(0)
    kx, kp = jax.random.split(key)
    x = jax.random.normal(kx, (B, N, dim), jnp.float32)
    params = init_params(kp, dim, heads, dim_head)

    out = attention_forward(x, params, heads=heads, dim_head=dim_head)
    out = jax.block_until_ready(out)

    ref = _reference(x, params, heads=heads, dim_head=dim_head)
    assert out.shape == (B, N, dim)
    # bf16 MXU operands + EUP approx reciprocal -> relaxed tolerance vs f32 ref.
    assert jnp.allclose(out, ref, atol=2e-2, rtol=2e-2), "mismatch vs reference"

    print("KERNEL_OK")
</pallas_src>

<mosaic_0001>
module attributes {stable_mosaic.version = 11 : i64} {
  func.func @_attention_kernel(%arg0: i32, %arg1: memref<16x32xf32, #tpu.memory_space<vmem>>, %arg2: memref<1x32xf32, #tpu.memory_space<vmem>>, %arg3: memref<1x32xf32, #tpu.memory_space<vmem>>, %arg4: memref<32x192xbf16, #tpu.memory_space<vmem>>, %arg5: memref<64x32xbf16, #tpu.memory_space<vmem>>, %arg6: memref<1x32xf32, #tpu.memory_space<vmem>>, %arg7: memref<16x32xf32, #tpu.memory_space<vmem>>) attributes {dimension_semantics = [#tpu.dimension_semantics<arbitrary>], iteration_bounds = array<i64: 1>, scalar_prefetch = 0 : i64, scratch_operands = 0 : i64, tpu.core_type = #tpu.core_type<tc>, window_params = [{pipeline_mode = #tpu.pipeline_mode<synchronous>, transform_indices = @transform_0, window_bounds = array<i64: 16, 32>}, {pipeline_mode = #tpu.pipeline_mode<synchronous>, transform_indices = @transform_1, window_bounds = array<i64: 1, 32>}, {pipeline_mode = #tpu.pipeline_mode<synchronous>, transform_indices = @transform_2, window_bounds = array<i64: 1, 32>}, {pipeline_mode = #tpu.pipeline_mode<synchronous>, transform_indices = @transform_3, window_bounds = array<i64: 32, 192>}, {pipeline_mode = #tpu.pipeline_mode<synchronous>, transform_indices = @transform_4, window_bounds = array<i64: 64, 32>}, {pipeline_mode = #tpu.pipeline_mode<synchronous>, transform_indices = @transform_5, window_bounds = array<i64: 1, 32>}, {pipeline_mode = #tpu.pipeline_mode<synchronous>, transform_indices = @transform_6, window_bounds = array<i64: 16, 32>}]} {
    %c0 = arith.constant 0 : index
    %c0_0 = arith.constant 0 : index
    %0 = vector.load %arg1[%c0, %c0_0] : memref<16x32xf32, #tpu.memory_space<vmem>>, vector<16x32xf32>
    %c0_1 = arith.constant 0 : index
    %c0_2 = arith.constant 0 : index
    %1 = vector.load %arg2[%c0_1, %c0_2] : memref<1x32xf32, #tpu.memory_space<vmem>>, vector<1x32xf32>
    %c0_3 = arith.constant 0 : index
    %c0_4 = arith.constant 0 : index
    %2 = vector.load %arg3[%c0_3, %c0_4] : memref<1x32xf32, #tpu.memory_space<vmem>>, vector<1x32xf32>
    %c0_5 = arith.constant 0 : index
    %c0_6 = arith.constant 0 : index
    %3 = vector.load %arg6[%c0_5, %c0_6] : memref<1x32xf32, #tpu.memory_space<vmem>>, vector<1x32xf32>
    %cst = arith.constant dense<0.000000e+00> : vector<16xf32>
    %4 = vector.multi_reduction <add>, %0, %cst [1] : vector<16x32xf32> to vector<16xf32>
    %5 = vector.shape_cast %4 : vector<16xf32> to vector<16x1xf32>
    %cst_7 = arith.constant 3.200000e+01 : f32
    %6 = vector.broadcast %cst_7 : f32 to vector<16x1xf32>
    %7 = arith.divf %5, %6 : vector<16x1xf32>
    %8 = vector.broadcast %7 : vector<16x1xf32> to vector<16x32xf32>
    %9 = arith.subf %0, %8 : vector<16x32xf32>
    %10 = arith.mulf %9, %9 : vector<16x32xf32>
    %cst_8 = arith.constant dense<0.000000e+00> : vector<16xf32>
    %11 = vector.multi_reduction <add>, %10, %cst_8 [1] : vector<16x32xf32> to vector<16xf32>
    %12 = vector.shape_cast %11 : vector<16xf32> to vector<16x1xf32>
    %cst_9 = arith.constant 3.200000e+01 : f32
    %13 = vector.broadcast %cst_9 : f32 to vector<16x1xf32>
    %14 = arith.divf %12, %13 : vector<16x1xf32>
    %cst_10 = arith.constant 9.99999974E-6 : f32
    %15 = vector.broadcast %cst_10 : f32 to vector<16x1xf32>
    %16 = arith.addf %14, %15 : vector<16x1xf32>
    %17 = math.rsqrt %16 : vector<16x1xf32>
    %18 = vector.broadcast %17 : vector<16x1xf32> to vector<16x32xf32>
    %19 = arith.mulf %9, %18 : vector<16x32xf32>
    %20 = vector.broadcast %1 : vector<1x32xf32> to vector<16x32xf32>
    %21 = arith.mulf %19, %20 : vector<16x32xf32>
    %22 = vector.broadcast %2 : vector<1x32xf32> to vector<16x32xf32>
    %23 = arith.addf %21, %22 : vector<16x32xf32>
    %24 = arith.truncf %23 : vector<16x32xf32> to vector<16x32xbf16>
    %c0_11 = arith.constant 0 : index
    %c0_12 = arith.constant 0 : index
    %25 = vector.load %arg4[%c0_11, %c0_12] : memref<32x192xbf16, #tpu.memory_space<vmem>>, vector<32x192xbf16>
    %cst_13 = arith.constant dense<0.000000e+00> : vector<16x192xf32>
    %26 = tpu.matmul %24, %25, %cst_13 {dimension_numbers = #tpu.dot_dimension_numbers<[1], [0], [0], [1], [0, 0, 1, 1], [], []>} : vector<16x32xbf16>, vector<32x192xbf16>, vector<16x192xf32> -> vector<16x192xf32>
    %27 = vector.extract_strided_slice %26 {offsets = [0, 0], sizes = [16, 64], strides = [1, 1]} : vector<16x192xf32> to vector<16x64xf32>
    %28 = vector.extract_strided_slice %27 {offsets = [0, 0], sizes = [16, 16], strides = [1, 1]} : vector<16x64xf32> to vector<16x16xf32>
    %29 = vector.shape_cast %28 : vector<16x16xf32> to vector<2x8x16xf32>
    %30 = vector.extract_strided_slice %27 {offsets = [0, 16], sizes = [16, 16], strides = [1, 1]} : vector<16x64xf32> to vector<16x16xf32>
    %31 = vector.shape_cast %30 : vector<16x16xf32> to vector<2x8x16xf32>
    %32 = vector.extract_strided_slice %27 {offsets = [0, 32], sizes = [16, 16], strides = [1, 1]} : vector<16x64xf32> to vector<16x16xf32>
    %33 = vector.shape_cast %32 : vector<16x16xf32> to vector<2x8x16xf32>
    %34 = vector.extract_strided_slice %27 {offsets = [0, 48], sizes = [16, 16], strides = [1, 1]} : vector<16x64xf32> to vector<16x16xf32>
    %35 = vector.shape_cast %34 : vector<16x16xf32> to vector<2x8x16xf32>
    %36 = tpu.concatenate %29, %31, %33, %35 in 0 : vector<2x8x16xf32>, vector<2x8x16xf32>, vector<2x8x16xf32>, vector<2x8x16xf32> -> vector<8x8x16xf32>
    %37 = arith.truncf %36 : vector<8x8x16xf32> to vector<8x8x16xbf16>
    %38 = vector.extract_strided_slice %26 {offsets = [0, 64], sizes = [16, 64], strides = [1, 1]} : vector<16x192xf32> to vector<16x64xf32>
    %39 = vector.extract_strided_slice %38 {offsets = [0, 0], sizes = [16, 16], strides = [1, 1]} : vector<16x64xf32> to vector<16x16xf32>
    %40 = vector.shape_cast %39 : vector<16x16xf32> to vector<2x8x16xf32>
    %41 = vector.extract_strided_slice %38 {offsets = [0, 16], sizes = [16, 16], strides = [1, 1]} : vector<16x64xf32> to vector<16x16xf32>
    %42 = vector.shape_cast %41 : vector<16x16xf32> to vector<2x8x16xf32>
    %43 = vector.extract_strided_slice %38 {offsets = [0, 32], sizes = [16, 16], strides = [1, 1]} : vector<16x64xf32> to vector<16x16xf32>
    %44 = vector.shape_cast %43 : vector<16x16xf32> to vector<2x8x16xf32>
    %45 = vector.extract_strided_slice %38 {offsets = [0, 48], sizes = [16, 16], strides = [1, 1]} : vector<16x64xf32> to vector<16x16xf32>
    %46 = vector.shape_cast %45 : vector<16x16xf32> to vector<2x8x16xf32>
    %47 = tpu.concatenate %40, %42, %44, %46 in 0 : vector<2x8x16xf32>, vector<2x8x16xf32>, vector<2x8x16xf32>, vector<2x8x16xf32> -> vector<8x8x16xf32>
    %48 = arith.truncf %47 : vector<8x8x16xf32> to vector<8x8x16xbf16>
    %49 = vector.extract_strided_slice %26 {offsets = [0, 128], sizes = [16, 64], strides = [1, 1]} : vector<16x192xf32> to vector<16x64xf32>
    %50 = vector.extract_strided_slice %49 {offsets = [0, 0], sizes = [16, 16], strides = [1, 1]} : vector<16x64xf32> to vector<16x16xf32>
    %51 = vector.shape_cast %50 : vector<16x16xf32> to vector<2x8x16xf32>
    %52 = vector.extract_strided_slice %49 {offsets = [0, 16], sizes = [16, 16], strides = [1, 1]} : vector<16x64xf32> to vector<16x16xf32>
    %53 = vector.shape_cast %52 : vector<16x16xf32> to vector<2x8x16xf32>
    %54 = vector.extract_strided_slice %49 {offsets = [0, 32], sizes = [16, 16], strides = [1, 1]} : vector<16x64xf32> to vector<16x16xf32>
    %55 = vector.shape_cast %54 : vector<16x16xf32> to vector<2x8x16xf32>
    %56 = vector.extract_strided_slice %49 {offsets = [0, 48], sizes = [16, 16], strides = [1, 1]} : vector<16x64xf32> to vector<16x16xf32>
    %57 = vector.shape_cast %56 : vector<16x16xf32> to vector<2x8x16xf32>
    %58 = tpu.concatenate %51, %53, %55, %57 in 0 : vector<2x8x16xf32>, vector<2x8x16xf32>, vector<2x8x16xf32>, vector<2x8x16xf32> -> vector<8x8x16xf32>
    %59 = arith.truncf %58 : vector<8x8x16xf32> to vector<8x8x16xbf16>
    "tpu.trace_start"() <{level = 10 : i32, message = "gnd,gmd->gnm"}> : () -> ()
    %cst_14 = arith.constant dense<0.000000e+00> : vector<8x8x8xf32>
    %60 = tpu.matmul %37, %48, %cst_14 {dimension_numbers = #tpu.dot_dimension_numbers<[2], [2], [1], [1], [0, 0, 0, 1, 1, 1], [0], [0]>} : vector<8x8x16xbf16>, vector<8x8x16xbf16>, vector<8x8x8xf32> -> vector<8x8x8xf32>
    "tpu.trace_stop"() : () -> ()
    %cst_15 = arith.constant dense<0xFF800000> : vector<8x8xf32>
    %61 = vector.multi_reduction <maximumf>, %60, %cst_15 [2] : vector<8x8x8xf32> to vector<8x8xf32>
    %62 = vector.shape_cast %61 : vector<8x8xf32> to vector<8x8x1xf32>
    %63 = vector.broadcast %62 : vector<8x8x1xf32> to vector<8x8x8xf32>
    %64 = arith.subf %60, %63 : vector<8x8x8xf32>
    %65 = math.exp %64 : vector<8x8x8xf32>
    %cst_16 = arith.constant dense<0.000000e+00> : vector<8x8xf32>
    %66 = vector.multi_reduction <add>, %65, %cst_16 [2] : vector<8x8x8xf32> to vector<8x8xf32>
    %67 = vector.shape_cast %66 : vector<8x8xf32> to vector<8x8x1xf32>
    %68 = tpu.reciprocal %67 {approx = true} : vector<8x8x1xf32> -> vector<8x8x1xf32>
    %69 = vector.broadcast %68 : vector<8x8x1xf32> to vector<8x8x8xf32>
    %70 = arith.mulf %65, %69 : vector<8x8x8xf32>
    %71 = arith.truncf %70 : vector<8x8x8xf32> to vector<8x8x8xbf16>
    "tpu.trace_start"() <{level = 10 : i32, message = "gnm,gmd->gnd"}> : () -> ()
    %cst_17 = arith.constant dense<0.000000e+00> : vector<8x8x16xf32>
    %72 = tpu.matmul %71, %59, %cst_17 {dimension_numbers = #tpu.dot_dimension_numbers<[2], [1], [1], [2], [0, 0, 0, 1, 1, 2], [0], [0]>} : vector<8x8x8xbf16>, vector<8x8x16xbf16>, vector<8x8x16xf32> -> vector<8x8x16xf32>
    "tpu.trace_stop"() : () -> ()
    %73 = vector.shape_cast %72 : vector<8x8x16xf32> to vector<4x2x8x16xf32>
    %74 = vector.extract_strided_slice %73 {offsets = [0, 0, 0, 0], sizes = [1, 2, 8, 16], strides = [1, 1, 1, 1]} : vector<4x2x8x16xf32> to vector<1x2x8x16xf32>
    %75 = vector.shape_cast %74 : vector<1x2x8x16xf32> to vector<2x8x16xf32>
    %76 = vector.extract_strided_slice %73 {offsets = [1, 0, 0, 0], sizes = [1, 2, 8, 16], strides = [1, 1, 1, 1]} : vector<4x2x8x16xf32> to vector<1x2x8x16xf32>
    %77 = vector.shape_cast %76 : vector<1x2x8x16xf32> to vector<2x8x16xf32>
    %78 = vector.extract_strided_slice %73 {offsets = [2, 0, 0, 0], sizes = [1, 2, 8, 16], strides = [1, 1, 1, 1]} : vector<4x2x8x16xf32> to vector<1x2x8x16xf32>
    %79 = vector.shape_cast %78 : vector<1x2x8x16xf32> to vector<2x8x16xf32>
    %80 = vector.extract_strided_slice %73 {offsets = [3, 0, 0, 0], sizes = [1, 2, 8, 16], strides = [1, 1, 1, 1]} : vector<4x2x8x16xf32> to vector<1x2x8x16xf32>
    %81 = vector.shape_cast %80 : vector<1x2x8x16xf32> to vector<2x8x16xf32>
    %82 = tpu.concatenate %75, %77, %79, %81 in 2 : vector<2x8x16xf32>, vector<2x8x16xf32>, vector<2x8x16xf32>, vector<2x8x16xf32> -> vector<2x8x64xf32>
    %83 = vector.shape_cast %82 : vector<2x8x64xf32> to vector<16x64xf32>
    %84 = arith.truncf %83 : vector<16x64xf32> to vector<16x64xbf16>
    %c0_18 = arith.constant 0 : index
    %c0_19 = arith.constant 0 : index
    %85 = vector.load %arg5[%c0_18, %c0_19] : memref<64x32xbf16, #tpu.memory_space<vmem>>, vector<64x32xbf16>
    %cst_20 = arith.constant dense<0.000000e+00> : vector<16x32xf32>
    %86 = tpu.matmul %84, %85, %cst_20 {dimension_numbers = #tpu.dot_dimension_numbers<[1], [0], [0], [1], [0, 0, 1, 1], [], []>} : vector<16x64xbf16>, vector<64x32xbf16>, vector<16x32xf32> -> vector<16x32xf32>
    %87 = vector.broadcast %3 : vector<1x32xf32> to vector<16x32xf32>
    %88 = arith.addf %86, %87 : vector<16x32xf32>
    %c0_21 = arith.constant 0 : index
    %c0_22 = arith.constant 0 : index
    %89 = vector.load %arg7[%c0_21, %c0_22] : memref<16x32xf32, #tpu.memory_space<vmem>>, vector<16x32xf32>
    tpu.vector_store %arg7[%c0_21, %c0_22], %88 {strides = array<i32>} : memref<16x32xf32, #tpu.memory_space<vmem>>, vector<16x32xf32>,
    return
  }
  func.func @transform_0(%arg0: i32) -> (i32, i32) {
    %c0_i32 = arith.constant 0 : i32
    %c0_i32_0 = arith.constant 0 : i32
    %c0_i32_1 = arith.constant 0 : i32
    return %c0_i32, %c0_i32_0 : i32, i32
  }
  func.func @transform_1(%arg0: i32) -> (i32, i32) {
    %c0_i32 = arith.constant 0 : i32
    %c0_i32_0 = arith.constant 0 : i32
    %c0_i32_1 = arith.constant 0 : i32
    return %c0_i32, %c0_i32_0 : i32, i32
  }
  func.func @transform_2(%arg0: i32) -> (i32, i32) {
    %c0_i32 = arith.constant 0 : i32
    %c0_i32_0 = arith.constant 0 : i32
    %c0_i32_1 = arith.constant 0 : i32
    return %c0_i32, %c0_i32_0 : i32, i32
  }
  func.func @transform_3(%arg0: i32) -> (i32, i32) {
    %c0_i32 = arith.constant 0 : i32
    %c0_i32_0 = arith.constant 0 : i32
    %c0_i32_1 = arith.constant 0 : i32
    return %c0_i32, %c0_i32_0 : i32, i32
  }
  func.func @transform_4(%arg0: i32) -> (i32, i32) {
    %c0_i32 = arith.constant 0 : i32
    %c0_i32_0 = arith.constant 0 : i32
    %c0_i32_1 = arith.constant 0 : i32
    return %c0_i32, %c0_i32_0 : i32, i32
  }
  func.func @transform_5(%arg0: i32) -> (i32, i32) {
    %c0_i32 = arith.constant 0 : i32
    %c0_i32_0 = arith.constant 0 : i32
    %c0_i32_1 = arith.constant 0 : i32
    return %c0_i32, %c0_i32_0 : i32, i32
  }
  func.func @transform_6(%arg0: i32) -> (i32, i32) {
    %c0_i32 = arith.constant 0 : i32
    %c0_i32_0 = arith.constant 0 : i32
    %c0_i32_1 = arith.constant 0 : i32
    return %c0_i32, %c0_i32_0 : i32, i32
  }
}

</mosaic_0001>

<llo_original>
// kernel: tpu_custom_call.1
$region0: #{tpu_custom_call.1}
  #allocation0 [shape = 'u32[]', space=smem, size = 0x4, offset = 0x4, fixed_abs, tag = 'smem constant byte address 0x4 - core index']
  #allocation1 [shape = 'u32[144,128]{1,0:T(1,128)}', space=vmem, size = 0x12000, scoped, tag = 'internal scratch']
  %s0 = inlined_call_operand.vmem [shape: f32[16,32], index: 0, kind: input, shape index: {}]
  %s1 = inlined_call_operand.vmem [shape: f32[1,32], index: 1, kind: input, shape index: {}]
  %s2 = inlined_call_operand.vmem [shape: f32[1,32], index: 2, kind: input, shape index: {}]
  %s3 = inlined_call_operand.vmem [shape: bf16[32,192], index: 3, kind: input, shape index: {}]
  %s4 = inlined_call_operand.vmem [shape: bf16[64,32], index: 4, kind: input, shape index: {}]
  %s5 = inlined_call_operand.vmem [shape: f32[1,32], index: 5, kind: input, shape index: {}]
  %s6 = inlined_call_operand.hbm [shape: f32[16,32], index: 6, kind: output, shape index: {}]
  %s7 = sld [smem:[#allocation0]]
  $region34: #{tpu_custom_call.1} parent=0
    _
  %s9 = ssub.s32 1, %s7
  %s10 = scalar_select 0, %s9, %s7
  $region1: #{tpu_custom_call.1} parent=0
    #allocation2 [shape = 'u8[8192]{0}', space=vmem, size = 0x2000, scoped, tag = 'output window, operand 0, single buffered']
    #allocation3 [shape = 's32[1]{0}', space=sflag, size = 0x4, scoped, tag = 'scoped memory for tpu_custom_call.1']
    %11 = vsyncpa [#allocation3], 0
    // Predicated region
    $region2: #{tpu_custom_call.1} parent=1 // pred_check
      _
    $region3: #{tpu_custom_call.1} parent=1 // pred_check_branch
      %13 = sbr.rel (0) target = $region5
    $region4: #{tpu_custom_call.1} parent=1 // pred_region
      _
    $region5: #{tpu_custom_call.1} parent=1 // pred_fallthru
      _
    // Predicated region
    $region6: #{tpu_custom_call.1} parent=1 // pred_check
      _
    $region7: #{tpu_custom_call.1} parent=1 // pred_check_branch
      %15 = sbr.rel (0) target = $region9
    $region8: #{tpu_custom_call.1} parent=1 // pred_region
      _
    $region9: #{tpu_custom_call.1} parent=1 // pred_fallthru
      _
    // Predicated region
    $region10: #{tpu_custom_call.1} parent=1 // pred_check
      _
    $region11: #{tpu_custom_call.1} parent=1 // pred_check_branch
      %17 = sbr.rel (0) target = $region13
    $region12: #{tpu_custom_call.1} parent=1 // pred_region
      _
    $region13: #{tpu_custom_call.1} parent=1 // pred_fallthru
      _
    // Predicated region
    $region14: #{tpu_custom_call.1} parent=1 // pred_check
      _
    $region15: #{tpu_custom_call.1} parent=1 // pred_check_branch
      %19 = sbr.rel (0) target = $region17
    $region16: #{tpu_custom_call.1} parent=1 // pred_region
      _
    $region17: #{tpu_custom_call.1} parent=1 // pred_fallthru
      _
    // Predicated region
    $region18: #{tpu_custom_call.1} parent=1 // pred_check
      _
    $region19: #{tpu_custom_call.1} parent=1 // pred_check_branch
      %21 = sbr.rel (0) target = $region21
    $region20: #{tpu_custom_call.1} parent=1 // pred_region
      _
    $region21: #{tpu_custom_call.1} parent=1 // pred_fallthru
      _
    // Predicated region
    $region22: #{tpu_custom_call.1} parent=1 // pred_check
      _
    $region23: #{tpu_custom_call.1} parent=1 // pred_check_branch
      %23 = sbr.rel (0) target = $region25
    $region24: #{tpu_custom_call.1} parent=1 // pred_region
      _
    $region25: #{tpu_custom_call.1} parent=1 // pred_fallthru
      _
    %v25 = vld [vmem:[%s0] sm:$0xff]
    %v26 = vld [vmem:[%s0 + $0x8] sm:$0xff]
    %v27 = vld [vmem:[%s1] sm:$0x1]
    %v28 = vld [vmem:[%s2] sm:$0x1]
    %v29 = vld [vmem:[%s5] sm:$0x1]
    %vm30 = vcmask 261120
    %v31 = vsel %vm30, %v25, 0.0
    %32 = vadd.xlane.f32.xlu0 %v31
    %v33 = vpop.xlane.xlu0 %32
    %v34 = vsel %vm30, %v26, 0.0
    %35 = vadd.xlane.f32.xlu0 %v34
    %v36 = vpop.xlane.xlu0 %35
    %v37 = vrcp.pop 32.0
    %v38 = vmul.f32 %v33, %v37
    %v39 = vmul.f32 %v36, %v37
    %v40 = vsub.f32 %v25, %v38
    %v41 = vsub.f32 %v26, %v39
    %v42 = vmul.f32 %v40, %v40
    %v43 = vmul.f32 %v41, %v41
    %v44 = vsel %vm30, %v42, 0.0
    %45 = vadd.xlane.f32.xlu0 %v44
    %v46 = vpop.xlane.xlu0 %45
    %v47 = vsel %vm30, %v43, 0.0
    %48 = vadd.xlane.f32.xlu0 %v47
    %v49 = vpop.xlane.xlu0 %48
    %v50 = vmul.f32 %v46, %v37
    %v51 = vmul.f32 %v49, %v37
    %v52 = vadd.f32 %v50, 1e-05
    %v53 = vadd.f32 %v51, 1e-05
    %v54 = vrsqrt.pop %v52
    %v55 = vrsqrt.pop %v53
    %v56 = vmul.f32 %v40, %v54
    %v57 = vmul.f32 %v41, %v55
    %v59 = vlaneseq
    %v60 = vshrl.u32 %v59, 7
    %v61 = vsub.s32 0, %v60
    %v62 = vrot.slane %v27, %v61
    %v64 = vmul.f32 %v56, %v62
    %v65 = vmul.f32 %v57, %v62
    %v67 = vlaneseq
    %v68 = vshrl.u32 %v67, 7
    %v69 = vsub.s32 0, %v68
    %v70 = vrot.slane %v28, %v69
    %v72 = vadd.f32 %v64, %v70
    %v73 = vadd.f32 %v65, %v70
    %v74 = vpack.c.bf16 %v73, %v72
    %v75 = vld [vmem:[%s3] sm:$0xff]
    %v76 = vld [vmem:[%s3 + $0x8] sm:$0xff]
    %v77 = vld [vmem:[%s3 + $0x10] sm:$0xff]
    %v78 = vld [vmem:[%s3 + $0x18] sm:$0xff]
    %v83 = vunpack.c.l.b16 %v75
    %v84 = vunpack.c.h.b16 %v75
    %v85 = vunpack.c.l.b16 %v76
    %v86 = vunpack.c.h.b16 %v76
    %v87 = vunpack.c.l.b16 %v77
    %v88 = vunpack.c.h.b16 %v77
    %v89 = vunpack.c.l.b16 %v78
    %v90 = vunpack.c.h.b16 %v78
    %v91 = vpack.c.b16 %v85, %v83
    %v92 = vpack.c.b16 %v86, %v84
    %v93 = vpack.c.b16 %v89, %v87
    %v94 = vpack.c.b16 %v90, %v88
    %v100 = vsel %vm30, %v74, 0
    %102 = vmatprep.subr.bf16.mxu0 %v92
    %103 = vmatpush1.bf16.msra.mxu0 %v91
    %104 = vmatprep.subr.bf16.mxu0 %v94
    %105 = vmatpush1.bf16.msra.mxu0 %v93
    %106 = vmatprep.subr.bf16.mxu0 0
    %107 = vmatpush1.bf16.msra.mxu0 0
    %108 = vmatprep.subr.bf16.mxu0 0
    %109 = vmatpush1.bf16.msra.mxu0 0
    %110 = vmatprep.subr.bf16.mxu0 0
    %111 = vmatpush1.bf16.msra.mxu0 0
    %112 = vmatprep.subr.bf16.mxu0 0
    %113 = vmatpush1.bf16.msra.mxu0 0
    %114 = vmatprep.subr.bf16.mxu0 0
    %115 = vmatpush1.bf16.msra.mxu0 0
    %116 = vmatprep.subr.bf16.mxu0 0
    %117 = vmatpush1.bf16.msra.mxu0 0
    %118 = vmatprep.subr.bf16.mxu0 0
    %119 = vmatpush1.bf16.msra.mxu0 0
    %120 = vmatprep.subr.bf16.mxu0 0
    %121 = vmatpush1.bf16.msra.mxu0 0
    %122 = vmatprep.subr.bf16.mxu0 0
    %123 = vmatpush1.bf16.msra.mxu0 0
    %124 = vmatprep.subr.bf16.mxu0 0
    %125 = vmatpush1.bf16.msra.mxu0 0
    %126 = vmatprep.subr.bf16.mxu0 0
    %127 = vmatpush1.bf16.msra.mxu0 0
    %128 = vmatprep.subr.bf16.mxu0 0
    %129 = vmatpush1.bf16.msra.mxu0 0
    %130 = vmatprep.subr.bf16.mxu0 0
    %131 = vmatpush1.bf16.msra.mxu0 0
    %132 = vmatprep.subr.bf16.mxu0 0
    %133 = vmatpush1.bf16.msra.mxu0 0
    %134 = vmatprep.mubr.bf16.mxu0 0
    %135 = vmatmul.mubr.bf16.gmra.mrb[0].mxu0 %v100
    %v136 = vpop.f32.mrb[0].mxu0
    %v137 = vadd.f32 0.0, %v136
    %v138 = vpop.f32.mrb[0].mxu0
    %v139 = vadd.f32 0.0, %v138
    %v140 = vpop.f32.mrb[0].mxu0
    %v141 = vadd.f32 0.0, %v140
    %v142 = vpop.f32.mrb[0].mxu0
    %v143 = vadd.f32 0.0, %v142
    %144 = vdwg.mxu0
    %147 = vrot.lane.b32.xlu0 %v137, 112
    %v148 = vpop.permute.xlu0 %147
    %149 = vrot.lane.b32.xlu0 %v141, 112
    %v150 = vpop.permute.xlu0 %149
    %153 = vrot.lane.b32.xlu0 %v137, 96
    %v154 = vpop.permute.xlu0 %153
    %155 = vrot.lane.b32.xlu0 %v141, 96
    %v156 = vpop.permute.xlu0 %155
    %159 = vrot.lane.b32.xlu0 %v137, 80
    %v160 = vpop.permute.xlu0 %159
    %161 = vrot.lane.b32.xlu0 %v141, 80
    %v162 = vpop.permute.xlu0 %161
    %v165 = vpack.c.bf16 %v137, %v137
    %v166 = vpack.c.bf16 %v141, %v141
    %v167 = vpack.c.bf16 %v148, %v148
    %v168 = vpack.c.bf16 %v150, %v150
    %v169 = vpack.c.bf16 %v154, %v154
    %v170 = vpack.c.bf16 %v156, %v156
    %v171 = vpack.c.bf16 %v160, %v160
    %v172 = vpack.c.bf16 %v162, %v162
    %175 = vrot.lane.b32.xlu0 %v139, 112
    %v176 = vpop.permute.xlu0 %175
    %177 = vrot.lane.b32.xlu0 %v143, 112
    %v178 = vpop.permute.xlu0 %177
    %181 = vrot.lane.b32.xlu0 %v139, 96
    %v182 = vpop.permute.xlu0 %181
    %183 = vrot.lane.b32.xlu0 %v143, 96
    %v184 = vpop.permute.xlu0 %183
    %187 = vrot.lane.b32.xlu0 %v139, 80
    %v188 = vpop.permute.xlu0 %187
    %189 = vrot.lane.b32.xlu0 %v143, 80
    %v190 = vpop.permute.xlu0 %189
    %v193 = vpack.c.bf16 %v139, %v139
    %v194 = vpack.c.bf16 %v143, %v143
    %v195 = vpack.c.bf16 %v176, %v176
    %v196 = vpack.c.bf16 %v178, %v178
    %v197 = vpack.c.bf16 %v182, %v182
    %v198 = vpack.c.bf16 %v184, %v184
    %v199 = vpack.c.bf16 %v188, %v188
    %v200 = vpack.c.bf16 %v190, %v190
    %202 = vrot.lane.b32.xlu0 %v165, 64
    %v203 = vpop.permute.xlu0 %202
    %vm204 = vcmask 130048
    %v206 = vsel %vm204, %v165, 0
    %v209 = vsel %vm204, %v203, 0
    %211 = vmatprep.subr.bf16.mxu0 0
    %212 = vmatpush1.bf16.xpose.msra.mxu0 %v209
    %213 = vmatprep.subr.bf16.mxu0 0
    %214 = vmatpush1.bf16.xpose.msra.mxu0 0
    %215 = vmatprep.subr.bf16.mxu0 0
    %216 = vmatpush1.bf16.xpose.msra.mxu0 0
    %217 = vmatprep.subr.bf16.mxu0 0
    %218 = vmatpush1.bf16.xpose.msra.mxu0 0
    %219 = vmatprep.subr.bf16.mxu0 0
    %220 = vmatpush1.bf16.xpose.msra.mxu0 0
    %221 = vmatprep.subr.bf16.mxu0 0
    %222 = vmatpush1.bf16.xpose.msra.mxu0 0
    %223 = vmatprep.subr.bf16.mxu0 0
    %224 = vmatpush1.bf16.xpose.msra.mxu0 0
    %225 = vmatprep.subr.bf16.mxu0 0
    %226 = vmatpush1.bf16.xpose.msra.mxu0 0
    %227 = vmatprep.subr.bf16.mxu0 0
    %228 = vmatpush1.bf16.xpose.msra.mxu0 0
    %229 = vmatprep.subr.bf16.mxu0 0
    %230 = vmatpush1.bf16.xpose.msra.mxu0 0
    %231 = vmatprep.subr.bf16.mxu0 0
    %232 = vmatpush1.bf16.xpose.msra.mxu0 0
    %233 = vmatprep.subr.bf16.mxu0 0
    %234 = vmatpush1.bf16.xpose.msra.mxu0 0
    %235 = vmatprep.subr.bf16.mxu0 0
    %236 = vmatpush1.bf16.xpose.msra.mxu0 0
    %237 = vmatprep.subr.bf16.mxu0 0
    %238 = vmatpush1.bf16.xpose.msra.mxu0 0
    %239 = vmatprep.subr.bf16.mxu0 0
    %240 = vmatpush1.bf16.xpose.msra.mxu0 0
    %241 = vmatprep.subr.bf16.mxu0 0
    %242 = vmatpush1.bf16.xpose.msra.mxu0 0
    %243 = vmatprep.mubr.bf16.mxu0 0
    %244 = vmatmul.mubr.bf16.gmra.mrb[0].mxu0 %v206
    %v245 = vpop.f32.mrb[0].mxu0
    %v246 = vadd.f32 0.0, %v245
    %v247 = vpop.f32.mrb[0].mxu0
    %v248 = vpop.f32.mrb[0].mxu0
    %v249 = vpop.f32.mrb[0].mxu0
    %250 = vdwg.mxu0
    %252 = vrot.lane.b32.xlu0 %v166, 64
    %v253 = vpop.permute.xlu0 %252
    %v255 = vsel %vm204, %v166, 0
    %v258 = vsel %vm204, %v253, 0
    %260 = vmatprep.subr.bf16.mxu0 0
    %261 = vmatpush1.bf16.xpose.msra.mxu0 %v258
    %262 = vmatprep.subr.bf16.mxu0 0
    %263 = vmatpush1.bf16.xpose.msra.mxu0 0
    %264 = vmatprep.subr.bf16.mxu0 0
    %265 = vmatpush1.bf16.xpose.msra.mxu0 0
    %266 = vmatprep.subr.bf16.mxu0 0
    %267 = vmatpush1.bf16.xpose.msra.mxu0 0
    %268 = vmatprep.subr.bf16.mxu0 0
    %269 = vmatpush1.bf16.xpose.msra.mxu0 0
    %270 = vmatprep.subr.bf16.mxu0 0
    %271 = vmatpush1.bf16.xpose.msra.mxu0 0
    %272 = vmatprep.subr.bf16.mxu0 0
    %273 = vmatpush1.bf16.xpose.msra.mxu0 0
    %274 = vmatprep.subr.bf16.mxu0 0
    %275 = vmatpush1.bf16.xpose.msra.mxu0 0
    %276 = vmatprep.subr.bf16.mxu0 0
    %277 = vmatpush1.bf16.xpose.msra.mxu0 0
    %278 = vmatprep.subr.bf16.mxu0 0
    %279 = vmatpush1.bf16.xpose.msra.mxu0 0
    %280 = vmatprep.subr.bf16.mxu0 0
    %281 = vmatpush1.bf16.xpose.msra.mxu0 0
    %282 = vmatprep.subr.bf16.mxu0 0
    %283 = vmatpush1.bf16.xpose.msra.mxu0 0
    %284 = vmatprep.subr.bf16.mxu0 0
    %285 = vmatpush1.bf16.xpose.msra.mxu0 0
    %286 = vmatprep.subr.bf16.mxu0 0
    %287 = vmatpush1.bf16.xpose.msra.mxu0 0
    %288 = vmatprep.subr.bf16.mxu0 0
    %289 = vmatpush1.bf16.xpose.msra.mxu0 0
    %290 = vmatprep.subr.bf16.mxu0 0
    %291 = vmatpush1.bf16.xpose.msra.mxu0 0
    %292 = vmatprep.mubr.bf16.mxu0 0
    %293 = vmatmul.mubr.bf16.gmra.mrb[0].mxu0 %v255
    %v294 = vpop.f32.mrb[0].mxu0
    %v295 = vadd.f32 0.0, %v294
    %v296 = vpop.f32.mrb[0].mxu0
    %v297 = vpop.f32.mrb[0].mxu0
    %v298 = vpop.f32.mrb[0].mxu0
    %299 = vdwg.mxu0
    %301 = vrot.lane.b32.xlu0 %v167, 64
    %v302 = vpop.permute.xlu0 %301
    %v304 = vsel %vm204, %v167, 0
    %v307 = vsel %vm204, %v302, 0
    %309 = vmatprep.subr.bf16.mxu0 0
    %310 = vmatpush1.bf16.xpose.msra.mxu0 %v307
    %311 = vmatprep.subr.bf16.mxu0 0
    %312 = vmatpush1.bf16.xpose.msra.mxu0 0
    %313 = vmatprep.subr.bf16.mxu0 0
    %314 = vmatpush1.bf16.xpose.msra.mxu0 0
    %315 = vmatprep.subr.bf16.mxu0 0
    %316 = vmatpush1.bf16.xpose.msra.mxu0 0
    %317 = vmatprep.subr.bf16.mxu0 0
    %318 = vmatpush1.bf16.xpose.msra.mxu0 0
    %319 = vmatprep.subr.bf16.mxu0 0
    %320 = vmatpush1.bf16.xpose.msra.mxu0 0
    %321 = vmatprep.subr.bf16.mxu0 0
    %322 = vmatpush1.bf16.xpose.msra.mxu0 0
    %323 = vmatprep.subr.bf16.mxu0 0
    %324 = vmatpush1.bf16.xpose.msra.mxu0 0
    %325 = vmatprep.subr.bf16.mxu0 0
    %326 = vmatpush1.bf16.xpose.msra.mxu0 0
    %327 = vmatprep.subr.bf16.mxu0 0
    %328 = vmatpush1.bf16.xpose.msra.mxu0 0
    %329 = vmatprep.subr.bf16.mxu0 0
    %330 = vmatpush1.bf16.xpose.msra.mxu0 0
    %331 = vmatprep.subr.bf16.mxu0 0
    %332 = vmatpush1.bf16.xpose.msra.mxu0 0
    %333 = vmatprep.subr.bf16.mxu0 0
    %334 = vmatpush1.bf16.xpose.msra.mxu0 0
    %335 = vmatprep.subr.bf16.mxu0 0
    %336 = vmatpush1.bf16.xpose.msra.mxu0 0
    %337 = vmatprep.subr.bf16.mxu0 0
    %338 = vmatpush1.bf16.xpose.msra.mxu0 0
    %339 = vmatprep.subr.bf16.mxu0 0
    %340 = vmatpush1.bf16.xpose.msra.mxu0 0
    %341 = vmatprep.mubr.bf16.mxu0 0
    %342 = vmatmul.mubr.bf16.gmra.mrb[0].mxu0 %v304
    %v343 = vpop.f32.mrb[0].mxu0
    %v344 = vadd.f32 0.0, %v343
    %v345 = vpop.f32.mrb[0].mxu0
    %v346 = vpop.f32.mrb[0].mxu0
    %v347 = vpop.f32.mrb[0].mxu0
    %348 = vdwg.mxu0
    %350 = vrot.lane.b32.xlu0 %v168, 64
    %v351 = vpop.permute.xlu0 %350
    %v353 = vsel %vm204, %v168, 0
    %v356 = vsel %vm204, %v351, 0
    %358 = vmatprep.subr.bf16.mxu0 0
    %359 = vmatpush1.bf16.xpose.msra.mxu0 %v356
    %360 = vmatprep.subr.bf16.mxu0 0
    %361 = vmatpush1.bf16.xpose.msra.mxu0 0
    %362 = vmatprep.subr.bf16.mxu0 0
    %363 = vmatpush1.bf16.xpose.msra.mxu0 0
    %364 = vmatprep.subr.bf16.mxu0 0
    %365 = vmatpush1.bf16.xpose.msra.mxu0 0
    %366 = vmatprep.subr.bf16.mxu0 0
    %367 = vmatpush1.bf16.xpose.msra.mxu0 0
    %368 = vmatprep.subr.bf16.mxu0 0
    %369 = vmatpush1.bf16.xpose.msra.mxu0 0
    %370 = vmatprep.subr.bf16.mxu0 0
    %371 = vmatpush1.bf16.xpose.msra.mxu0 0
    %372 = vmatprep.subr.bf16.mxu0 0
    %373 = vmatpush1.bf16.xpose.msra.mxu0 0
    %374 = vmatprep.subr.bf16.mxu0 0
    %375 = vmatpush1.bf16.xpose.msra.mxu0 0
    %376 = vmatprep.subr.bf16.mxu0 0
    %377 = vmatpush1.bf16.xpose.msra.mxu0 0
    %378 = vmatprep.subr.bf16.mxu0 0
    %379 = vmatpush1.bf16.xpose.msra.mxu0 0
    %380 = vmatprep.subr.bf16.mxu0 0
    %381 = vmatpush1.bf16.xpose.msra.mxu0 0
    %382 = vmatprep.subr.bf16.mxu0 0
    %383 = vmatpush1.bf16.xpose.msra.mxu0 0
    %384 = vmatprep.subr.bf16.mxu0 0
    %385 = vmatpush1.bf16.xpose.msra.mxu0 0
    %386 = vmatprep.subr.bf16.mxu0 0
    %387 = vmatpush1.bf16.xpose.msra.mxu0 0
    %388 = vmatprep.subr.bf16.mxu0 0
    %389 = vmatpush1.bf16.xpose.msra.mxu0 0
    %390 = vmatprep.mubr.bf16.mxu0 0
    %391 = vmatmul.mubr.bf16.gmra.mrb[0].mxu0 %v353
    %v392 = vpop.f32.mrb[0].mxu0
    %v393 = vadd.f32 0.0, %v392
    %v394 = vpop.f32.mrb[0].mxu0
    %v395 = vpop.f32.mrb[0].mxu0
    %v396 = vpop.f32.mrb[0].mxu0
    %397 = vdwg.mxu0
    %399 = vrot.lane.b32.xlu0 %v169, 64
    %v400 = vpop.permute.xlu0 %399
    %v402 = vsel %vm204, %v169, 0
    %v405 = vsel %vm204, %v400, 0
    %407 = vmatprep.subr.bf16.mxu0 0
    %408 = vmatpush1.bf16.xpose.msra.mxu0 %v405
    %409 = vmatprep.subr.bf16.mxu0 0
    %410 = vmatpush1.bf16.xpose.msra.mxu0 0
    %411 = vmatprep.subr.bf16.mxu0 0
    %412 = vmatpush1.bf16.xpose.msra.mxu0 0
    %413 = vmatprep.subr.bf16.mxu0 0
    %414 = vmatpush1.bf16.xpose.msra.mxu0 0
    %415 = vmatprep.subr.bf16.mxu0 0
    %416 = vmatpush1.bf16.xpose.msra.mxu0 0
    %417 = vmatprep.subr.bf16.mxu0 0
    %418 = vmatpush1.bf16.xpose.msra.mxu0 0
    %419 = vmatprep.subr.bf16.mxu0 0
    %420 = vmatpush1.bf16.xpose.msra.mxu0 0
    %421 = vmatprep.subr.bf16.mxu0 0
    %422 = vmatpush1.bf16.xpose.msra.mxu0 0
    %423 = vmatprep.subr.bf16.mxu0 0
    %424 = vmatpush1.bf16.xpose.msra.mxu0 0
    %425 = vmatprep.subr.bf16.mxu0 0
    %426 = vmatpush1.bf16.xpose.msra.mxu0 0
    %427 = vmatprep.subr.bf16.mxu0 0
    %428 = vmatpush1.bf16.xpose.msra.mxu0 0
    %429 = vmatprep.subr.bf16.mxu0 0
    %430 = vmatpush1.bf16.xpose.msra.mxu0 0
    %431 = vmatprep.subr.bf16.mxu0 0
    %432 = vmatpush1.bf16.xpose.msra.mxu0 0
    %433 = vmatprep.subr.bf16.mxu0 0
    %434 = vmatpush1.bf16.xpose.msra.mxu0 0
    %435 = vmatprep.subr.bf16.mxu0 0
    %436 = vmatpush1.bf16.xpose.msra.mxu0 0
    %437 = vmatprep.subr.bf16.mxu0 0
    %438 = vmatpush1.bf16.xpose.msra.mxu0 0
    %439 = vmatprep.mubr.bf16.mxu0 0
    %440 = vmatmul.mubr.bf16.gmra.mrb[0].mxu0 %v402
    %v441 = vpop.f32.mrb[0].mxu0
    %v442 = vadd.f32 0.0, %v441
    %v443 = vpop.f32.mrb[0].mxu0
    %v444 = vpop.f32.mrb[0].mxu0
    %v445 = vpop.f32.mrb[0].mxu0
    %446 = vdwg.mxu0
    %448 = vrot.lane.b32.xlu0 %v170, 64
    %v449 = vpop.permute.xlu0 %448
    %v451 = vsel %vm204, %v170, 0
    %v454 = vsel %vm204, %v449, 0
    %456 = vmatprep.subr.bf16.mxu0 0
    %457 = vmatpush1.bf16.xpose.msra.mxu0 %v454
    %458 = vmatprep.subr.bf16.mxu0 0
    %459 = vmatpush1.bf16.xpose.msra.mxu0 0
    %460 = vmatprep.subr.bf16.mxu0 0
    %461 = vmatpush1.bf16.xpose.msra.mxu0 0
    %462 = vmatprep.subr.bf16.mxu0 0
    %463 = vmatpush1.bf16.xpose.msra.mxu0 0
    %464 = vmatprep.subr.bf16.mxu0 0
    %465 = vmatpush1.bf16.xpose.msra.mxu0 0
    %466 = vmatprep.subr.bf16.mxu0 0
    %467 = vmatpush1.bf16.xpose.msra.mxu0 0
    %468 = vmatprep.subr.bf16.mxu0 0
    %469 = vmatpush1.bf16.xpose.msra.mxu0 0
    %470 = vmatprep.subr.bf16.mxu0 0
    %471 = vmatpush1.bf16.xpose.msra.mxu0 0
    %472 = vmatprep.subr.bf16.mxu0 0
    %473 = vmatpush1.bf16.xpose.msra.mxu0 0
    %474 = vmatprep.subr.bf16.mxu0 0
    %475 = vmatpush1.bf16.xpose.msra.mxu0 0
    %476 = vmatprep.subr.bf16.mxu0 0
    %477 = vmatpush1.bf16.xpose.msra.mxu0 0
    %478 = vmatprep.subr.bf16.mxu0 0
    %479 = vmatpush1.bf16.xpose.msra.mxu0 0
    %480 = vmatprep.subr.bf16.mxu0 0
    %481 = vmatpush1.bf16.xpose.msra.mxu0 0
    %482 = vmatprep.subr.bf16.mxu0 0
    %483 = vmatpush1.bf16.xpose.msra.mxu0 0
    %484 = vmatprep.subr.bf16.mxu0 0
    %485 = vmatpush1.bf16.xpose.msra.mxu0 0
    %486 = vmatprep.subr.bf16.mxu0 0
    %487 = vmatpush1.bf16.xpose.msra.mxu0 0
    %488 = vmatprep.mubr.bf16.mxu0 0
    %489 = vmatmul.mubr.bf16.gmra.mrb[0].mxu0 %v451
    %v490 = vpop.f32.mrb[0].mxu0
    %v491 = vadd.f32 0.0, %v490
    %v492 = vpop.f32.mrb[0].mxu0
    %v493 = vpop.f32.mrb[0].mxu0
    %v494 = vpop.f32.mrb[0].mxu0
    %495 = vdwg.mxu0
    %497 = vrot.lane.b32.xlu0 %v171, 64
    %v498 = vpop.permute.xlu0 %497
    %v500 = vsel %vm204, %v171, 0
    %v503 = vsel %vm204, %v498, 0
    %505 = vmatprep.subr.bf16.mxu0 0
    %506 = vmatpush1.bf16.xpose.msra.mxu0 %v503
    %507 = vmatprep.subr.bf16.mxu0 0
    %508 = vmatpush1.bf16.xpose.msra.mxu0 0
    %509 = vmatprep.subr.bf16.mxu0 0
    %510 = vmatpush1.bf16.xpose.msra.mxu0 0
    %511 = vmatprep.subr.bf16.mxu0 0
    %512 = vmatpush1.bf16.xpose.msra.mxu0 0
    %513 = vmatprep.subr.bf16.mxu0 0
    %514 = vmatpush1.bf16.xpose.msra.mxu0 0
    %515 = vmatprep.subr.bf16.mxu0 0
    %516 = vmatpush1.bf16.xpose.msra.mxu0 0
    %517 = vmatprep.subr.bf16.mxu0 0
    %518 = vmatpush1.bf16.xpose.msra.mxu0 0
    %519 = vmatprep.subr.bf16.mxu0 0
    %520 = vmatpush1.bf16.xpose.msra.mxu0 0
    %521 = vmatprep.subr.bf16.mxu0 0
    %522 = vmatpush1.bf16.xpose.msra.mxu0 0
    %523 = vmatprep.subr.bf16.mxu0 0
    %524 = vmatpush1.bf16.xpose.msra.mxu0 0
    %525 = vmatprep.subr.bf16.mxu0 0
    %526 = vmatpush1.bf16.xpose.msra.mxu0 0
    %527 = vmatprep.subr.bf16.mxu0 0
    %528 = vmatpush1.bf16.xpose.msra.mxu0 0
    %529 = vmatprep.subr.bf16.mxu0 0
    %530 = vmatpush1.bf16.xpose.msra.mxu0 0
    %531 = vmatprep.subr.bf16.mxu0 0
    %532 = vmatpush1.bf16.xpose.msra.mxu0 0
    %533 = vmatprep.subr.bf16.mxu0 0
    %534 = vmatpush1.bf16.xpose.msra.mxu0 0
    %535 = vmatprep.subr.bf16.mxu0 0
    %536 = vmatpush1.bf16.xpose.msra.mxu0 0
    %537 = vmatprep.mubr.bf16.mxu0 0
    %538 = vmatmul.mubr.bf16.gmra.mrb[0].mxu0 %v500
    %v539 = vpop.f32.mrb[0].mxu0
    %v540 = vadd.f32 0.0, %v539
    %v541 = vpop.f32.mrb[0].mxu0
    %v542 = vpop.f32.mrb[0].mxu0
    %v543 = vpop.f32.mrb[0].mxu0
    %544 = vdwg.mxu0
    %546 = vrot.lane.b32.xlu0 %v172, 64
    %v547 = vpop.permute.xlu0 %546
    %v549 = vsel %vm204, %v172, 0
    %v552 = vsel %vm204, %v547, 0
    %554 = vmatprep.subr.bf16.mxu0 0
    %555 = vmatpush1.bf16.xpose.msra.mxu0 %v552
    %556 = vmatprep.subr.bf16.mxu0 0
    %557 = vmatpush1.bf16.xpose.msra.mxu0 0
    %558 = vmatprep.subr.bf16.mxu0 0
    %559 = vmatpush1.bf16.xpose.msra.mxu0 0
    %560 = vmatprep.subr.bf16.mxu0 0
    %561 = vmatpush1.bf16.xpose.msra.mxu0 0
    %562 = vmatprep.subr.bf16.mxu0 0
    %563 = vmatpush1.bf16.xpose.msra.mxu0 0
    %564 = vmatprep.subr.bf16.mxu0 0
    %565 = vmatpush1.bf16.xpose.msra.mxu0 0
    %566 = vmatprep.subr.bf16.mxu0 0
    %567 = vmatpush1.bf16.xpose.msra.mxu0 0
    %568 = vmatprep.subr.bf16.mxu0 0
    %569 = vmatpush1.bf16.xpose.msra.mxu0 0
    %570 = vmatprep.subr.bf16.mxu0 0
    %571 = vmatpush1.bf16.xpose.msra.mxu0 0
    %572 = vmatprep.subr.bf16.mxu0 0
    %573 = vmatpush1.bf16.xpose.msra.mxu0 0
    %574 = vmatprep.subr.bf16.mxu0 0
    %575 = vmatpush1.bf16.xpose.msra.mxu0 0
    %576 = vmatprep.subr.bf16.mxu0 0
    %577 = vmatpush1.bf16.xpose.msra.mxu0 0
    %578 = vmatprep.subr.bf16.mxu0 0
    %579 = vmatpush1.bf16.xpose.msra.mxu0 0
    %580 = vmatprep.subr.bf16.mxu0 0
    %581 = vmatpush1.bf16.xpose.msra.mxu0 0
    %582 = vmatprep.subr.bf16.mxu0 0
    %583 = vmatpush1.bf16.xpose.msra.mxu0 0
    %584 = vmatprep.subr.bf16.mxu0 0
    %585 = vmatpush1.bf16.xpose.msra.mxu0 0
    %586 = vmatprep.mubr.bf16.mxu0 0
    %587 = vmatmul.mubr.bf16.gmra.mrb[0].mxu0 %v549
    %v588 = vpop.f32.mrb[0].mxu0
    %v589 = vadd.f32 0.0, %v588
    %v590 = vpop.f32.mrb[0].mxu0
    %v591 = vpop.f32.mrb[0].mxu0
    %v592 = vpop.f32.mrb[0].mxu0
    %593 = vdwg.mxu0
    %vm594 = vcmask 64512
    %v595 = vsel %vm594, %v246, -inf
    %596 = vmax.xlane.f32.xlu0 %v595
    %v597 = vpop.xlane.xlu0 %596
    %v598 = vsel %vm594, %v295, -inf
    %599 = vmax.xlane.f32.xlu0 %v598
    %v600 = vpop.xlane.xlu0 %599
    %v601 = vsel %vm594, %v344, -inf
    %602 = vmax.xlane.f32.xlu0 %v601
    %v603 = vpop.xlane.xlu0 %602
    %v604 = vsel %vm594, %v393, -inf
    %605 = vmax.xlane.f32.xlu0 %v604
    %v606 = vpop.xlane.xlu0 %605
    %v607 = vsel %vm594, %v442, -inf
    %608 = vmax.xlane.f32.xlu0 %v607
    %v609 = vpop.xlane.xlu0 %608
    %v610 = vsel %vm594, %v491, -inf
    %611 = vmax.xlane.f32.xlu0 %v610
    %v612 = vpop.xlane.xlu0 %611
    %v613 = vsel %vm594, %v540, -inf
    %614 = vmax.xlane.f32.xlu0 %v613
    %v615 = vpop.xlane.xlu0 %614
    %v616 = vsel %vm594, %v589, -inf
    %617 = vmax.xlane.f32.xlu0 %v616
    %v618 = vpop.xlane.xlu0 %617
    %v619 = vsub.f32 %v246, %v597
    %v620 = vsub.f32 %v295, %v600
    %v621 = vsub.f32 %v344, %v603
    %v622 = vsub.f32 %v393, %v606
    %v623 = vsub.f32 %v442, %v609
    %v624 = vsub.f32 %v491, %v612
    %v625 = vsub.f32 %v540, %v615
    %v626 = vsub.f32 %v589, %v618
    %v627 = vmul.f32 %v619, 1.442695
    %v628 = vpow.pop %v627
    %v629 = vmul.f32 %v620, 1.442695
    %v630 = vpow.pop %v629
    %v631 = vmul.f32 %v621, 1.442695
    %v632 = vpow.pop %v631
    %v633 = vmul.f32 %v622, 1.442695
    %v634 = vpow.pop %v633
    %v635 = vmul.f32 %v623, 1.442695
    %v636 = vpow.pop %v635
    %v637 = vmul.f32 %v624, 1.442695
    %v638 = vpow.pop %v637
    %v639 = vmul.f32 %v625, 1.442695
    %v640 = vpow.pop %v639
    %v641 = vmul.f32 %v626, 1.442695
    %v642 = vpow.pop %v641
    %v643 = vsel %vm594, %v628, 0.0
    %644 = vadd.xlane.f32.xlu0 %v643
    %v645 = vpop.xlane.xlu0 %644
    %v646 = vsel %vm594, %v630, 0.0
    %647 = vadd.xlane.f32.xlu0 %v646
    %v648 = vpop.xlane.xlu0 %647
    %v649 = vsel %vm594, %v632, 0.0
    %650 = vadd.xlane.f32.xlu0 %v649
    %v651 = vpop.xlane.xlu0 %650
    %v652 = vsel %vm594, %v634, 0.0
    %653 = vadd.xlane.f32.xlu0 %v652
    %v654 = vpop.xlane.xlu0 %653
    %v655 = vsel %vm594, %v636, 0.0
    %656 = vadd.xlane.f32.xlu0 %v655
    %v657 = vpop.xlane.xlu0 %656
    %v658 = vsel %vm594, %v638, 0.0
    %659 = vadd.xlane.f32.xlu0 %v658
    %v660 = vpop.xlane.xlu0 %659
    %v661 = vsel %vm594, %v640, 0.0
    %662 = vadd.xlane.f32.xlu0 %v661
    %v663 = vpop.xlane.xlu0 %662
    %v664 = vsel %vm594, %v642, 0.0
    %665 = vadd.xlane.f32.xlu0 %v664
    %v666 = vpop.xlane.xlu0 %665
    %v667 = vrcp.pop %v645
    %v668 = vrcp.pop %v648
    %v669 = vrcp.pop %v651
    %v670 = vrcp.pop %v654
    %v671 = vrcp.pop %v657
    %v672 = vrcp.pop %v660
    %v673 = vrcp.pop %v663
    %v674 = vrcp.pop %v666
    %v675 = vmul.f32 %v628, %v667
    %v676 = vmul.f32 %v630, %v668
    %v677 = vmul.f32 %v632, %v669
    %v678 = vmul.f32 %v634, %v670
    %v679 = vmul.f32 %v636, %v671
    %v680 = vmul.f32 %v638, %v672
    %v681 = vmul.f32 %v640, %v673
    %v682 = vmul.f32 %v642, %v674
    %v683 = vpack.c.bf16 %v675, %v675
    %v684 = vpack.c.bf16 %v676, %v676
    %v685 = vpack.c.bf16 %v677, %v677
    %v686 = vpack.c.bf16 %v678, %v678
    %v687 = vpack.c.bf16 %v679, %v679
    %v688 = vpack.c.bf16 %v680, %v680
    %v689 = vpack.c.bf16 %v681, %v681
    %v690 = vpack.c.bf16 %v682, %v682
    %v692 = vsel %vm594, %v683, 0
    %vm694 = vcmask 1043456
    %v696 = vsel %vm694, %v193, 0
    %698 = vmatprep.subr.bf16.mxu0 0
    %699 = vmatpush1.bf16.msra.mxu0 %v696
    %700 = vmatprep.subr.bf16.mxu0 0
    %701 = vmatpush1.bf16.msra.mxu0 0
    %702 = vmatprep.subr.bf16.mxu0 0
    %703 = vmatpush1.bf16.msra.mxu0 0
    %704 = vmatprep.subr.bf16.mxu0 0
    %705 = vmatpush1.bf16.msra.mxu0 0
    %706 = vmatprep.subr.bf16.mxu0 0
    %707 = vmatpush1.bf16.msra.mxu0 0
    %708 = vmatprep.subr.bf16.mxu0 0
    %709 = vmatpush1.bf16.msra.mxu0 0
    %710 = vmatprep.subr.bf16.mxu0 0
    %711 = vmatpush1.bf16.msra.mxu0 0
    %712 = vmatprep.subr.bf16.mxu0 0
    %713 = vmatpush1.bf16.msra.mxu0 0
    %714 = vmatprep.subr.bf16.mxu0 0
    %715 = vmatpush1.bf16.msra.mxu0 0
    %716 = vmatprep.subr.bf16.mxu0 0
    %717 = vmatpush1.bf16.msra.mxu0 0
    %718 = vmatprep.subr.bf16.mxu0 0
    %719 = vmatpush1.bf16.msra.mxu0 0
    %720 = vmatprep.subr.bf16.mxu0 0
    %721 = vmatpush1.bf16.msra.mxu0 0
    %722 = vmatprep.subr.bf16.mxu0 0
    %723 = vmatpush1.bf16.msra.mxu0 0
    %724 = vmatprep.subr.bf16.mxu0 0
    %725 = vmatpush1.bf16.msra.mxu0 0
    %726 = vmatprep.subr.bf16.mxu0 0
    %727 = vmatpush1.bf16.msra.mxu0 0
    %728 = vmatprep.subr.bf16.mxu0 0
    %729 = vmatpush1.bf16.msra.mxu0 0
    %730 = vmatprep.mubr.bf16.mxu0 0
    %731 = vmatmul.mubr.bf16.gmra.mrb[0].mxu0 %v692
    %v732 = vpop.f32.mrb[0].mxu0
    %v733 = vadd.f32 0.0, %v732
    %v734 = vpop.f32.mrb[0].mxu0
    %v735 = vpop.f32.mrb[0].mxu0
    %v736 = vpop.f32.mrb[0].mxu0
    %737 = vdwg.mxu0
    %v739 = vsel %vm594, %v684, 0
    %v742 = vsel %vm694, %v194, 0
    %744 = vmatprep.subr.bf16.mxu0 0
    %745 = vmatpush1.bf16.msra.mxu0 %v742
    %746 = vmatprep.subr.bf16.mxu0 0
    %747 = vmatpush1.bf16.msra.mxu0 0
    %748 = vmatprep.subr.bf16.mxu0 0
    %749 = vmatpush1.bf16.msra.mxu0 0
    %750 = vmatprep.subr.bf16.mxu0 0
    %751 = vmatpush1.bf16.msra.mxu0 0
    %752 = vmatprep.subr.bf16.mxu0 0
    %753 = vmatpush1.bf16.msra.mxu0 0
    %754 = vmatprep.subr.bf16.mxu0 0
    %755 = vmatpush1.bf16.msra.mxu0 0
    %756 = vmatprep.subr.bf16.mxu0 0
    %757 = vmatpush1.bf16.msra.mxu0 0
    %758 = vmatprep.subr.bf16.mxu0 0
    %759 = vmatpush1.bf16.msra.mxu0 0
    %760 = vmatprep.subr.bf16.mxu0 0
    %761 = vmatpush1.bf16.msra.mxu0 0
    %762 = vmatprep.subr.bf16.mxu0 0
    %763 = vmatpush1.bf16.msra.mxu0 0
    %764 = vmatprep.subr.bf16.mxu0 0
    %765 = vmatpush1.bf16.msra.mxu0 0
    %766 = vmatprep.subr.bf16.mxu0 0
    %767 = vmatpush1.bf16.msra.mxu0 0
    %768 = vmatprep.subr.bf16.mxu0 0
    %769 = vmatpush1.bf16.msra.mxu0 0
    %770 = vmatprep.subr.bf16.mxu0 0
    %771 = vmatpush1.bf16.msra.mxu0 0
    %772 = vmatprep.subr.bf16.mxu0 0
    %773 = vmatpush1.bf16.msra.mxu0 0
    %774 = vmatprep.subr.bf16.mxu0 0
    %775 = vmatpush1.bf16.msra.mxu0 0
    %776 = vmatprep.mubr.bf16.mxu0 0
    %777 = vmatmul.mubr.bf16.gmra.mrb[0].mxu0 %v739
    %v778 = vpop.f32.mrb[0].mxu0
    %v779 = vadd.f32 0.0, %v778
    %v780 = vpop.f32.mrb[0].mxu0
    %v781 = vpop.f32.mrb[0].mxu0
    %v782 = vpop.f32.mrb[0].mxu0
    %783 = vdwg.mxu0
    %v785 = vsel %vm594, %v685, 0
    %v788 = vsel %vm694, %v195, 0
    %790 = vmatprep.subr.bf16.mxu0 0
    %791 = vmatpush1.bf16.msra.mxu0 %v788
    %792 = vmatprep.subr.bf16.mxu0 0
    %793 = vmatpush1.bf16.msra.mxu0 0
    %794 = vmatprep.subr.bf16.mxu0 0
    %795 = vmatpush1.bf16.msra.mxu0 0
    %796 = vmatprep.subr.bf16.mxu0 0
    %797 = vmatpush1.bf16.msra.mxu0 0
    %798 = vmatprep.subr.bf16.mxu0 0
    %799 = vmatpush1.bf16.msra.mxu0 0
    %800 = vmatprep.subr.bf16.mxu0 0
    %801 = vmatpush1.bf16.msra.mxu0 0
    %802 = vmatprep.subr.bf16.mxu0 0
    %803 = vmatpush1.bf16.msra.mxu0 0
    %804 = vmatprep.subr.bf16.mxu0 0
    %805 = vmatpush1.bf16.msra.mxu0 0
    %806 = vmatprep.subr.bf16.mxu0 0
    %807 = vmatpush1.bf16.msra.mxu0 0
    %808 = vmatprep.subr.bf16.mxu0 0
    %809 = vmatpush1.bf16.msra.mxu0 0
    %810 = vmatprep.subr.bf16.mxu0 0
    %811 = vmatpush1.bf16.msra.mxu0 0
    %812 = vmatprep.subr.bf16.mxu0 0
    %813 = vmatpush1.bf16.msra.mxu0 0
    %814 = vmatprep.subr.bf16.mxu0 0
    %815 = vmatpush1.bf16.msra.mxu0 0
    %816 = vmatprep.subr.bf16.mxu0 0
    %817 = vmatpush1.bf16.msra.mxu0 0
    %818 = vmatprep.subr.bf16.mxu0 0
    %819 = vmatpush1.bf16.msra.mxu0 0
    %820 = vmatprep.subr.bf16.mxu0 0
    %821 = vmatpush1.bf16.msra.mxu0 0
    %822 = vmatprep.mubr.bf16.mxu0 0
    %823 = vmatmul.mubr.bf16.gmra.mrb[0].mxu0 %v785
    %v824 = vpop.f32.mrb[0].mxu0
    %v825 = vadd.f32 0.0, %v824
    %v826 = vpop.f32.mrb[0].mxu0
    %v827 = vpop.f32.mrb[0].mxu0
    %v828 = vpop.f32.mrb[0].mxu0
    %829 = vdwg.mxu0
    %v831 = vsel %vm594, %v686, 0
    %v834 = vsel %vm694, %v196, 0
    %836 = vmatprep.subr.bf16.mxu0 0
    %837 = vmatpush1.bf16.msra.mxu0 %v834
    %838 = vmatprep.subr.bf16.mxu0 0
    %839 = vmatpush1.bf16.msra.mxu0 0
    %840 = vmatprep.subr.bf16.mxu0 0
    %841 = vmatpush1.bf16.msra.mxu0 0
    %842 = vmatprep.subr.bf16.mxu0 0
    %843 = vmatpush1.bf16.msra.mxu0 0
    %844 = vmatprep.subr.bf16.mxu0 0
    %845 = vmatpush1.bf16.msra.mxu0 0
    %846 = vmatprep.subr.bf16.mxu0 0
    %847 = vmatpush1.bf16.msra.mxu0 0
    %848 = vmatprep.subr.bf16.mxu0 0
    %849 = vmatpush1.bf16.msra.mxu0 0
    %850 = vmatprep.subr.bf16.mxu0 0
    %851 = vmatpush1.bf16.msra.mxu0 0
    %852 = vmatprep.subr.bf16.mxu0 0
    %853 = vmatpush1.bf16.msra.mxu0 0
    %854 = vmatprep.subr.bf16.mxu0 0
    %855 = vmatpush1.bf16.msra.mxu0 0
    %856 = vmatprep.subr.bf16.mxu0 0
    %857 = vmatpush1.bf16.msra.mxu0 0
    %858 = vmatprep.subr.bf16.mxu0 0
    %859 = vmatpush1.bf16.msra.mxu0 0
    %860 = vmatprep.subr.bf16.mxu0 0
    %861 = vmatpush1.bf16.msra.mxu0 0
    %862 = vmatprep.subr.bf16.mxu0 0
    %863 = vmatpush1.bf16.msra.mxu0 0
    %864 = vmatprep.subr.bf16.mxu0 0
    %865 = vmatpush1.bf16.msra.mxu0 0
    %866 = vmatprep.subr.bf16.mxu0 0
    %867 = vmatpush1.bf16.msra.mxu0 0
    %868 = vmatprep.mubr.bf16.mxu0 0
    %869 = vmatmul.mubr.bf16.gmra.mrb[0].mxu0 %v831
    %v870 = vpop.f32.mrb[0].mxu0
    %v871 = vadd.f32 0.0, %v870
    %v872 = vpop.f32.mrb[0].mxu0
    %v873 = vpop.f32.mrb[0].mxu0
    %v874 = vpop.f32.mrb[0].mxu0
    %875 = vdwg.mxu0
    %v877 = vsel %vm594, %v687, 0
    %v880 = vsel %vm694, %v197, 0
    %882 = vmatprep.subr.bf16.mxu0 0
    %883 = vmatpush1.bf16.msra.mxu0 %v880
    %884 = vmatprep.subr.bf16.mxu0 0
    %885 = vmatpush1.bf16.msra.mxu0 0
    %886 = vmatprep.subr.bf16.mxu0 0
    %887 = vmatpush1.bf16.msra.mxu0 0
    %888 = vmatprep.subr.bf16.mxu0 0
    %889 = vmatpush1.bf16.msra.mxu0 0
    %890 = vmatprep.subr.bf16.mxu0 0
    %891 = vmatpush1.bf16.msra.mxu0 0
    %892 = vmatprep.subr.bf16.mxu0 0
    %893 = vmatpush1.bf16.msra.mxu0 0
    %894 = vmatprep.subr.bf16.mxu0 0
    %895 = vmatpush1.bf16.msra.mxu0 0
    %896 = vmatprep.subr.bf16.mxu0 0
    %897 = vmatpush1.bf16.msra.mxu0 0
    %898 = vmatprep.subr.bf16.mxu0 0
    %899 = vmatpush1.bf16.msra.mxu0 0
    %900 = vmatprep.subr.bf16.mxu0 0
    %901 = vmatpush1.bf16.msra.mxu0 0
    %902 = vmatprep.subr.bf16.mxu0 0
    %903 = vmatpush1.bf16.msra.mxu0 0
    %904 = vmatprep.subr.bf16.mxu0 0
    %905 = vmatpush1.bf16.msra.mxu0 0
    %906 = vmatprep.subr.bf16.mxu0 0
    %907 = vmatpush1.bf16.msra.mxu0 0
    %908 = vmatprep.subr.bf16.mxu0 0
    %909 = vmatpush1.bf16.msra.mxu0 0
    %910 = vmatprep.subr.bf16.mxu0 0
    %911 = vmatpush1.bf16.msra.mxu0 0
    %912 = vmatprep.subr.bf16.mxu0 0
    %913 = vmatpush1.bf16.msra.mxu0 0
    %914 = vmatprep.mubr.bf16.mxu0 0
    %915 = vmatmul.mubr.bf16.gmra.mrb[0].mxu0 %v877
    %v916 = vpop.f32.mrb[0].mxu0
    %v917 = vadd.f32 0.0, %v916
    %v918 = vpop.f32.mrb[0].mxu0
    %v919 = vpop.f32.mrb[0].mxu0
    %v920 = vpop.f32.mrb[0].mxu0
    %921 = vdwg.mxu0
    %v923 = vsel %vm594, %v688, 0
    %v926 = vsel %vm694, %v198, 0
    %928 = vmatprep.subr.bf16.mxu0 0
    %929 = vmatpush1.bf16.msra.mxu0 %v926
    %930 = vmatprep.subr.bf16.mxu0 0
    %931 = vmatpush1.bf16.msra.mxu0 0
    %932 = vmatprep.subr.bf16.mxu0 0
    %933 = vmatpush1.bf16.msra.mxu0 0
    %934 = vmatprep.subr.bf16.mxu0 0
    %935 = vmatpush1.bf16.msra.mxu0 0
    %936 = vmatprep.subr.bf16.mxu0 0
    %937 = vmatpush1.bf16.msra.mxu0 0
    %938 = vmatprep.subr.bf16.mxu0 0
    %939 = vmatpush1.bf16.msra.mxu0 0
    %940 = vmatprep.subr.bf16.mxu0 0
    %941 = vmatpush1.bf16.msra.mxu0 0
    %942 = vmatprep.subr.bf16.mxu0 0
    %943 = vmatpush1.bf16.msra.mxu0 0
    %944 = vmatprep.subr.bf16.mxu0 0
    %945 = vmatpush1.bf16.msra.mxu0 0
    %946 = vmatprep.subr.bf16.mxu0 0
    %947 = vmatpush1.bf16.msra.mxu0 0
    %948 = vmatprep.subr.bf16.mxu0 0
    %949 = vmatpush1.bf16.msra.mxu0 0
    %950 = vmatprep.subr.bf16.mxu0 0
    %951 = vmatpush1.bf16.msra.mxu0 0
    %952 = vmatprep.subr.bf16.mxu0 0
    %953 = vmatpush1.bf16.msra.mxu0 0
    %954 = vmatprep.subr.bf16.mxu0 0
    %955 = vmatpush1.bf16.msra.mxu0 0
    %956 = vmatprep.subr.bf16.mxu0 0
    %957 = vmatpush1.bf16.msra.mxu0 0
    %958 = vmatprep.subr.bf16.mxu0 0
    %959 = vmatpush1.bf16.msra.mxu0 0
    %960 = vmatprep.mubr.bf16.mxu0 0
    %961 = vmatmul.mubr.bf16.gmra.mrb[0].mxu0 %v923
    %v962 = vpop.f32.mrb[0].mxu0
    %v963 = vadd.f32 0.0, %v962
    %v964 = vpop.f32.mrb[0].mxu0
    %v965 = vpop.f32.mrb[0].mxu0
    %v966 = vpop.f32.mrb[0].mxu0
    %967 = vdwg.mxu0
    %v969 = vsel %vm594, %v689, 0
    %v972 = vsel %vm694, %v199, 0
    %974 = vmatprep.subr.bf16.mxu0 0
    %975 = vmatpush1.bf16.msra.mxu0 %v972
    %976 = vmatprep.subr.bf16.mxu0 0
    %977 = vmatpush1.bf16.msra.mxu0 0
    %978 = vmatprep.subr.bf16.mxu0 0
    %979 = vmatpush1.bf16.msra.mxu0 0
    %980 = vmatprep.subr.bf16.mxu0 0
    %981 = vmatpush1.bf16.msra.mxu0 0
    %982 = vmatprep.subr.bf16.mxu0 0
    %983 = vmatpush1.bf16.msra.mxu0 0
    %984 = vmatprep.subr.bf16.mxu0 0
    %985 = vmatpush1.bf16.msra.mxu0 0
    %986 = vmatprep.subr.bf16.mxu0 0
    %987 = vmatpush1.bf16.msra.mxu0 0
    %988 = vmatprep.subr.bf16.mxu0 0
    %989 = vmatpush1.bf16.msra.mxu0 0
    %990 = vmatprep.subr.bf16.mxu0 0
    %991 = vmatpush1.bf16.msra.mxu0 0
    %992 = vmatprep.subr.bf16.mxu0 0
    %993 = vmatpush1.bf16.msra.mxu0 0
    %994 = vmatprep.subr.bf16.mxu0 0
    %995 = vmatpush1.bf16.msra.mxu0 0
    %996 = vmatprep.subr.bf16.mxu0 0
    %997 = vmatpush1.bf16.msra.mxu0 0
    %998 = vmatprep.subr.bf16.mxu0 0
    %999 = vmatpush1.bf16.msra.mxu0 0
    %1000 = vmatprep.subr.bf16.mxu0 0
    %1001 = vmatpush1.bf16.msra.mxu0 0
    %1002 = vmatprep.subr.bf16.mxu0 0
    %1003 = vmatpush1.bf16.msra.mxu0 0
    %1004 = vmatprep.subr.bf16.mxu0 0
    %1005 = vmatpush1.bf16.msra.mxu0 0
    %1006 = vmatprep.mubr.bf16.mxu0 0
    %1007 = vmatmul.mubr.bf16.gmra.mrb[0].mxu0 %v969
    %v1008 = vpop.f32.mrb[0].mxu0
    %v1009 = vadd.f32 0.0, %v1008
    %v1010 = vpop.f32.mrb[0].mxu0
    %v1011 = vpop.f32.mrb[0].mxu0
    %v1012 = vpop.f32.mrb[0].mxu0
    %1013 = vdwg.mxu0
    %v1015 = vsel %vm594, %v690, 0
    %v1018 = vsel %vm694, %v200, 0
    %1020 = vmatprep.subr.bf16.mxu0 0
    %1021 = vmatpush1.bf16.msra.mxu0 %v1018
    %1022 = vmatprep.subr.bf16.mxu0 0
    %1023 = vmatpush1.bf16.msra.mxu0 0
    %1024 = vmatprep.subr.bf16.mxu0 0
    %1025 = vmatpush1.bf16.msra.mxu0 0
    %1026 = vmatprep.subr.bf16.mxu0 0
    %1027 = vmatpush1.bf16.msra.mxu0 0
    %1028 = vmatprep.subr.bf16.mxu0 0
    %1029 = vmatpush1.bf16.msra.mxu0 0
    %1030 = vmatprep.subr.bf16.mxu0 0
    %1031 = vmatpush1.bf16.msra.mxu0 0
    %1032 = vmatprep.subr.bf16.mxu0 0
    %1033 = vmatpush1.bf16.msra.mxu0 0
    %1034 = vmatprep.subr.bf16.mxu0 0
    %1035 = vmatpush1.bf16.msra.mxu0 0
    %1036 = vmatprep.subr.bf16.mxu0 0
    %1037 = vmatpush1.bf16.msra.mxu0 0
    %1038 = vmatprep.subr.bf16.mxu0 0
    %1039 = vmatpush1.bf16.msra.mxu0 0
    %1040 = vmatprep.subr.bf16.mxu0 0
    %1041 = vmatpush1.bf16.msra.mxu0 0
    %1042 = vmatprep.subr.bf16.mxu0 0
    %1043 = vmatpush1.bf16.msra.mxu0 0
    %1044 = vmatprep.subr.bf16.mxu0 0
    %1045 = vmatpush1.bf16.msra.mxu0 0
    %1046 = vmatprep.subr.bf16.mxu0 0
    %1047 = vmatpush1.bf16.msra.mxu0 0
    %1048 = vmatprep.subr.bf16.mxu0 0
    %1049 = vmatpush1.bf16.msra.mxu0 0
    %1050 = vmatprep.subr.bf16.mxu0 0
    %1051 = vmatpush1.bf16.msra.mxu0 0
    %1052 = vmatprep.mubr.bf16.mxu0 0
    %1053 = vmatmul.mubr.bf16.gmra.mrb[0].mxu0 %v1015
    %v1054 = vpop.f32.mrb[0].mxu0
    %v1055 = vadd.f32 0.0, %v1054
    %v1056 = vpop.f32.mrb[0].mxu0
    %v1057 = vpop.f32.mrb[0].mxu0
    %v1058 = vpop.f32.mrb[0].mxu0
    %1059 = vdwg.mxu0
    %1062 = vrot.lane.b32.xlu0 %v825, 16
    %v1063 = vpop.permute.xlu0 %1062
    %1064 = vrot.lane.b32.xlu0 %v871, 16
    %v1065 = vpop.permute.xlu0 %1064
    %1070 = vrot.lane.b32.xlu0 %v917, 32
    %v1071 = vpop.permute.xlu0 %1070
    %1072 = vrot.lane.b32.xlu0 %v963, 32
    %v1073 = vpop.permute.xlu0 %1072
    %1078 = vrot.lane.b32.xlu0 %v1009, 48
    %v1079 = vpop.permute.xlu0 %1078
    %1080 = vrot.lane.b32.xlu0 %v1055, 48
    %v1081 = vpop.permute.xlu0 %1080
    %v1084 = vsel %vm204, %v733, %v1063
    %v1085 = vsel %vm204, %v779, %v1065
    %v1086 = vsel %vm30, %v1084, %v1071
    %v1087 = vsel %vm30, %v1085, %v1073
    %vm1088 = vcmask 392192
    %v1089 = vsel %vm1088, %v1086, %v1079
    %v1090 = vsel %vm1088, %v1087, %v1081
    %v1091 = vpack.c.bf16 %v1090, %v1089
    %v1092 = vld [vmem:[%s4] sm:$0xf]
    %v1093 = vld [vmem:[%s4 + $0x4] sm:$0xf]
    %v1094 = vld [vmem:[%s4 + $0x8] sm:$0xf]
    %v1095 = vld [vmem:[%s4 + $0xc] sm:$0xf]
    %v1096 = vld [vmem:[%s4 + $0x10] sm:$0xf]
    %v1097 = vld [vmem:[%s4 + $0x14] sm:$0xf]
    %v1098 = vld [vmem:[%s4 + $0x18] sm:$0xf]
    %v1099 = vld [vmem:[%s4 + $0x1c] sm:$0xf]
    %v1101 = vlaneseq
    %v1102 = vshrl.u32 %v1101, 7
    %v1103 = vsub.s32 0, %v1102
    %v1104 = vrot.slane %v29, %v1103
    %v1114 = vunpack.c.l.b16 %v1092
    %v1115 = vunpack.c.l.b16 %v1093
    %v1116 = vunpack.c.l.b16 %v1094
    %v1117 = vunpack.c.l.b16 %v1095
    %v1118 = vunpack.c.l.b16 %v1096
    %v1119 = vunpack.c.l.b16 %v1097
    %v1120 = vunpack.c.l.b16 %v1098
    %v1121 = vunpack.c.l.b16 %v1099
    %v1122 = vpack.c.b16 %v1115, %v1114
    %v1123 = vpack.c.b16 %v1117, %v1116
    %v1124 = vpack.c.b16 %v1119, %v1118
    %v1125 = vpack.c.b16 %v1121, %v1120
    %vm1130 = vcmask 523264
    %v1132 = vsel %vm1130, %v1091, 0
    %1134 = vmatprep.subr.bf16.mxu0 0
    %1135 = vmatpush1.bf16.msra.mxu0 %v1122
    %1136 = vmatprep.subr.bf16.mxu0 0
    %1137 = vmatpush1.bf16.msra.mxu0 %v1123
    %1138 = vmatprep.subr.bf16.mxu0 0
    %1139 = vmatpush1.bf16.msra.mxu0 %v1124
    %1140 = vmatprep.subr.bf16.mxu0 0
    %1141 = vmatpush1.bf16.msra.mxu0 %v1125
    %1142 = vmatprep.subr.bf16.mxu0 0
    %1143 = vmatpush1.bf16.msra.mxu0 0
    %1144 = vmatprep.subr.bf16.mxu0 0
    %1145 = vmatpush1.bf16.msra.mxu0 0
    %1146 = vmatprep.subr.bf16.mxu0 0
    %1147 = vmatpush1.bf16.msra.mxu0 0
    %1148 = vmatprep.subr.bf16.mxu0 0
    %1149 = vmatpush1.bf16.msra.mxu0 0
    %1150 = vmatprep.subr.bf16.mxu0 0
    %1151 = vmatpush1.bf16.msra.mxu0 0
    %1152 = vmatprep.subr.bf16.mxu0 0
    %1153 = vmatpush1.bf16.msra.mxu0 0
    %1154 = vmatprep.subr.bf16.mxu0 0
    %1155 = vmatpush1.bf16.msra.mxu0 0
    %1156 = vmatprep.subr.bf16.mxu0 0
    %1157 = vmatpush1.bf16.msra.mxu0 0
    %1158 = vmatprep.subr.bf16.mxu0 0
    %1159 = vmatpush1.bf16.msra.mxu0 0
    %1160 = vmatprep.subr.bf16.mxu0 0
    %1161 = vmatpush1.bf16.msra.mxu0 0
    %1162 = vmatprep.subr.bf16.mxu0 0
    %1163 = vmatpush1.bf16.msra.mxu0 0
    %1164 = vmatprep.subr.bf16.mxu0 0
    %1165 = vmatpush1.bf16.msra.mxu0 0
    %1166 = vmatprep.mubr.bf16.mxu0 0
    %1167 = vmatmul.mubr.bf16.gmra.mrb[0].mxu0 %v1132
    %v1168 = vpop.f32.mrb[0].mxu0
    %v1169 = vadd.f32 %v1104, %v1168
    %v1170 = vpop.f32.mrb[0].mxu0
    %v1171 = vpop.f32.mrb[0].mxu0
    %v1172 = vadd.f32 %v1104, %v1171
    %v1173 = vpop.f32.mrb[0].mxu0
    %1174 = vdwg.mxu0
    %1175 = vst.msk [vmem:[#allocation2] sm:$0xff] %vm30, %v1169
    %1176 = vst.msk [vmem:[#allocation2 + $0x8] sm:$0xff] %vm30, %v1172
    // Predicated region
    $region26: #{tpu_custom_call.1} parent=1 // pred_check
      _
    $region27: #{tpu_custom_call.1} parent=1 // pred_check_branch
      %1178 = sbr.rel (0) target = $region29
    $region28: #{tpu_custom_call.1} parent=1 // pred_region
      %s1180 = ssub.s32 256, 256
      %1181 = vsyncadd [#allocation3], %s1180
      %s1182 = sshll.u32 [#allocation2], 4
      %s1183 = int_to_ptr.vmem [resolvable:$true] %s1182
      %1188 = dma.vmem_to_hbm [thread:$0]  %s1183, 256, %s6, [#allocation3], 128, 128, 8
    $region29: #{tpu_custom_call.1} parent=1 // pred_fallthru
      _
    // Predicated region
    $region30: #{tpu_custom_call.1} parent=1 // pred_check
      _
    $region31: #{tpu_custom_call.1} parent=1 // pred_check_branch
      %1190 = sbr.rel (0) target = $region33
    $region32: #{tpu_custom_call.1} parent=1 // pred_region
      %1191 = dma.done [#allocation3], 256
    $region33: #{tpu_custom_call.1} parent=1 // pred_fallthru
      _
    %1192 = vsyncpa [#allocation3], 1

</llo_original>
